<compile_context>
chip_gen: v5e
topology: v5e:2x2
jax: 0.10.0
libtpu: 0.0.40
codegen_flags: <defaults>
</compile_context>

<pallas_src>
import jax
import jax.numpy as jnp
from jax.experimental import pallas as pl
from jax.experimental.pallas import tpu as pltpu


_POOL_MXU_THRESHOLD = 32  # pool sizes at/below this use the unrolled VPU-FMA path


def _round_up(x, m):
    return ((x + m - 1) // m) * m


def _patch_prompt_kernel(x_ref, w_ref, pk_ref, pv_ref, ek_ref, ev_ref):
    """One row-tile of the flattened (B*P) patch axis.

    x_ref  : (TM, D)        query patches (rows of flattened (B, P))
    w_ref  : (pool, D)      pre-folded A * K * key_d**-0.5
    pk_ref : (pool, iK*D)   first  half of the prompt, flattened over (length, emb)
    pv_ref : (pool, iV*D)   second half of the prompt, flattened over (length, emb)
    ek_ref : (TM, iK*D)     mixed prompt, Ek half
    ev_ref : (TM, iV*D)     mixed prompt, Ev half
    """
    x = x_ref[...]                                         # (TM, D)
    # scores[r, o] = sum_d x[r, d] * (A*K*scale)[o, d]  ==  x @ W^T (MXU, f32 accum)
    scores = jax.lax.dot_general(
        x, w_ref[...], (((1,), (1,)), ((), ())),
        preferred_element_type=jnp.float32)                # (TM, pool)
    aq_k = jax.nn.sigmoid(scores)                          # (TM, pool) f32

    pool = w_ref.shape[0]
    if pool <= _POOL_MXU_THRESHOLD:
        # Tiny contraction dim -> MXU would be >90% idle; do an unrolled
        # broadcast-FMA chain on the VPU over the (TM, half*D) output slabs.
        pk = pk_ref[...]                                   # (pool, iK*D)
        pv = pv_ref[...]                                   # (pool, iV*D)
        a0 = aq_k[:, 0:1]
        acc_k = a0 * pk[0:1, :]
        acc_v = a0 * pv[0:1, :]
        for o in range(1, pool):                           # static unroll (pool known at trace time)
            a_o = aq_k[:, o:o + 1]
            acc_k = acc_k + a_o * pk[o:o + 1, :]
            acc_v = acc_v + a_o * pv[o:o + 1, :]
    else:
        acc_k = jnp.dot(aq_k, pk_ref[...], preferred_element_type=jnp.float32)
        acc_v = jnp.dot(aq_k, pv_ref[...], preferred_element_type=jnp.float32)

    ek_ref[...] = acc_k.astype(ek_ref.dtype)
    ev_ref[...] = acc_v.astype(ev_ref.dtype)


def patch_prompt_forward(x_block, K, A, p, e_p_length, *, row_tile=256):
    """PatchPrompt.forward(x_querry=None, l in e_layers, x_block, train=False) equivalent."""
    B, P, D = x_block.shape
    pool, key_d = K.shape
    assert key_d == D, "emb_d must equal key_d (as implied by einsum 'bpd,bod')"
    L = int(e_p_length)
    iK = L // 2
    iV = L - iK
    out_dtype = x_block.dtype

    # Fold A, K and the 1/sqrt(key_d) scale into a single (pool, D) weight.
    W = (A * K * (float(key_d) ** -0.5)).astype(out_dtype)
    # Pre-split the prompt into the Ek / Ev halves so the kernel emits both outputs
    # directly (no post-hoc reshape+slice pass over the expanded output in HBM).
    pk = p[:, :iK, :].reshape(pool, iK * D).astype(out_dtype)
    pv = p[:, iK:, :].reshape(pool, iV * D).astype(out_dtype)

    # Flatten (B, P) into one row axis and tile it; each tile is one grid step.
    rows = B * P
    TM = min(int(row_tile), _round_up(rows, 8))
    rows_p = _round_up(rows, TM)
    x_flat = x_block.reshape(rows, D)
    if rows_p != rows:
        x_flat = jnp.pad(x_flat, ((0, rows_p - rows), (0, 0)))
    grid = (rows_p // TM,)

    itemsize = jnp.dtype(out_dtype).itemsize
    cost = pl.CostEstimate(
        flops=2 * rows * D * pool + 2 * rows * pool * L * D,
        transcendentals=rows * pool,
        bytes_accessed=(x_flat.size + W.size + pk.size + pv.size
                        + rows_p * L * D) * itemsize,
    )

    ek_flat, ev_flat = pl.pallas_call(
        _patch_prompt_kernel,
        out_shape=(
            jax.ShapeDtypeStruct((rows_p, iK * D), out_dtype),
            jax.ShapeDtypeStruct((rows_p, iV * D), out_dtype),
        ),
        grid=grid,
        in_specs=[
            pl.BlockSpec((TM, D), lambda r: (r, 0)),
            pl.BlockSpec((pool, D), lambda r: (0, 0)),
            pl.BlockSpec((pool, iK * D), lambda r: (0, 0)),
            pl.BlockSpec((pool, iV * D), lambda r: (0, 0)),
        ],
        out_specs=(
            pl.BlockSpec((TM, iK * D), lambda r: (r, 0)),
            pl.BlockSpec((TM, iV * D), lambda r: (r, 0)),
        ),
        compiler_params=pltpu.CompilerParams(
            dimension_semantics=("parallel",)),
        cost_estimate=cost,
    )(x_flat, W, pk, pv)

    Ek = ek_flat[:rows].reshape(B, P, iK, D)
    Ev = ev_flat[:rows].reshape(B, P, iV, D)
    loss = 0.0  # train=False path (ortho_penalty only applies during training)
    return [Ek, Ev], loss, x_block


def _reference(x_block, K, A, p):
    """Pure-JAX reference mirroring the PyTorch einsums exactly."""
    B = x_block.shape[0]
    Kb = jnp.broadcast_to(K, (B,) + K.shape)
    Ab = jnp.broadcast_to(A, (B,) + A.shape)
    pb = jnp.broadcast_to(p, (B,) + p.shape)
    a_querry = jnp.einsum('bpd,bod->bpod', x_block, Ab)
    aq_k = jnp.einsum('bpod,bod->bpo', a_querry, Kb) * (K.shape[-1] ** -0.5)
    aq_k = jax.nn.sigmoid(aq_k)
    P_ = jnp.einsum('bpo,bold->bpld', aq_k, pb)
    return P_


if __name__ == "__main__":
    # Small module hyper-params consistent with the forward (emb_d == key_d required
    # by the patch-wise einsum 'bpd,bod').
    emb_d = 32
    key_d = 32
    e_pool_size = 8     # prompt_param[0]
    e_p_length = 8      # prompt_param[1]
    B, P = 2, 16        # batch, num patches

    key = jax.random.PRNGKey(0)
    kx, kk, ka, kp = jax.random.split(key, 4)
    # Deterministic synthetic parameters (uniform init like tensor_prompt(..., ortho=False)).
    # TODO(synk): gram_schmidt re-orthogonalization at task boundaries is init-time
    # parameter processing, not part of the forward hot path; omitted here.
    K_param = jax.random.uniform(kk, (e_pool_size, key_d), dtype=jnp.float32)
    A_param = jax.random.uniform(ka, (e_pool_size, key_d), dtype=jnp.float32)
    p_param = jax.random.uniform(kp, (e_pool_size, e_p_length, emb_d), dtype=jnp.float32)
    x_block = jax.random.normal(kx, (B, P, emb_d), dtype=jnp.float32)

    (Ek, Ev), loss, x_out = patch_prompt_forward(
        x_block, K_param, A_param, p_param, e_p_length)
    jax.block_until_ready((Ek, Ev, x_out))

    # Correctness check against a pure-JAX transcription of the PyTorch einsums.
    P_ref = _reference(x_block, K_param, A_param, p_param)
    i = e_p_length // 2
    assert Ek.shape == (B, P, i, emb_d) and Ev.shape == (B, P, e_p_length - i, emb_d)
    assert jnp.allclose(Ek, P_ref[:, :, :i, :], atol=1e-5, rtol=1e-5)
    assert jnp.allclose(Ev, P_ref[:, :, i:, :], atol=1e-5, rtol=1e-5)
    assert jnp.array_equal(x_out, x_block)

    print("KERNEL_OK")
</pallas_src>

<mosaic_0001>
module attributes {stable_mosaic.version = 11 : i64} {
  func.func @_patch_prompt_kernel(%arg0: i32, %arg1: memref<32x32xf32, #tpu.memory_space<vmem>>, %arg2: memref<8x32xf32, #tpu.memory_space<vmem>>, %arg3: memref<8x128xf32, #tpu.memory_space<vmem>>, %arg4: memref<8x128xf32, #tpu.memory_space<vmem>>, %arg5: memref<32x128xf32, #tpu.memory_space<vmem>>, %arg6: memref<32x128xf32, #tpu.memory_space<vmem>>) attributes {dimension_semantics = [#tpu.dimension_semantics<parallel>], iteration_bounds = array<i64: 1>, scalar_prefetch = 0 : i64, scratch_operands = 0 : i64, tpu.core_type = #tpu.core_type<tc>, window_params = [{transform_indices = @transform_0, window_bounds = array<i64: 32, 32>}, {pipeline_mode = #tpu.pipeline_mode<synchronous>, transform_indices = @transform_1, window_bounds = array<i64: 8, 32>}, {pipeline_mode = #tpu.pipeline_mode<synchronous>, transform_indices = @transform_2, window_bounds = array<i64: 8, 128>}, {pipeline_mode = #tpu.pipeline_mode<synchronous>, transform_indices = @transform_3, window_bounds = array<i64: 8, 128>}, {transform_indices = @transform_4, window_bounds = array<i64: 32, 128>}, {transform_indices = @transform_5, window_bounds = array<i64: 32, 128>}]} {
    %c0 = arith.constant 0 : index
    %c0_0 = arith.constant 0 : index
    %0 = vector.load %arg1[%c0, %c0_0] : memref<32x32xf32, #tpu.memory_space<vmem>>, vector<32x32xf32>
    %c0_1 = arith.constant 0 : index
    %c0_2 = arith.constant 0 : index
    %1 = vector.load %arg2[%c0_1, %c0_2] : memref<8x32xf32, #tpu.memory_space<vmem>>, vector<8x32xf32>
    %cst = arith.constant dense<0.000000e+00> : vector<32x8xf32>
    %2 = tpu.matmul %0, %1, %cst {dimension_numbers = #tpu.dot_dimension_numbers<[1], [1], [0], [0], [0, 0, 1, 0], [], []>} : vector<32x32xf32>, vector<8x32xf32>, vector<32x8xf32> -> vector<32x8xf32>
    %3 = arith.negf %2 : vector<32x8xf32>
    %4 = math.exp %3 : vector<32x8xf32>
    %cst_3 = arith.constant 1.000000e+00 : f32
    %5 = vector.broadcast %cst_3 : f32 to vector<32x8xf32>
    %6 = arith.addf %5, %4 : vector<32x8xf32>
    %7 = arith.divf %5, %6 : vector<32x8xf32>
    %c0_4 = arith.constant 0 : index
    %c0_5 = arith.constant 0 : index
    %8 = vector.load %arg3[%c0_4, %c0_5] : memref<8x128xf32, #tpu.memory_space<vmem>>, vector<8x128xf32>
    %c0_6 = arith.constant 0 : index
    %c0_7 = arith.constant 0 : index
    %9 = vector.load %arg4[%c0_6, %c0_7] : memref<8x128xf32, #tpu.memory_space<vmem>>, vector<8x128xf32>
    %10 = vector.extract_strided_slice %7 {offsets = [0, 0], sizes = [32, 1], strides = [1, 1]} : vector<32x8xf32> to vector<32x1xf32>
    %11 = vector.extract_strided_slice %8 {offsets = [0, 0], sizes = [1, 128], strides = [1, 1]} : vector<8x128xf32> to vector<1x128xf32>
    %12 = vector.broadcast %10 : vector<32x1xf32> to vector<32x128xf32>
    %13 = vector.broadcast %11 : vector<1x128xf32> to vector<32x128xf32>
    %14 = arith.mulf %12, %13 : vector<32x128xf32>
    %15 = vector.extract_strided_slice %9 {offsets = [0, 0], sizes = [1, 128], strides = [1, 1]} : vector<8x128xf32> to vector<1x128xf32>
    %16 = vector.broadcast %10 : vector<32x1xf32> to vector<32x128xf32>
    %17 = vector.broadcast %15 : vector<1x128xf32> to vector<32x128xf32>
    %18 = arith.mulf %16, %17 : vector<32x128xf32>
    %19 = vector.extract_strided_slice %7 {offsets = [0, 1], sizes = [32, 1], strides = [1, 1]} : vector<32x8xf32> to vector<32x1xf32>
    %20 = vector.extract_strided_slice %8 {offsets = [1, 0], sizes = [1, 128], strides = [1, 1]} : vector<8x128xf32> to vector<1x128xf32>
    %21 = vector.broadcast %19 : vector<32x1xf32> to vector<32x128xf32>
    %22 = vector.broadcast %20 : vector<1x128xf32> to vector<32x128xf32>
    %23 = arith.mulf %21, %22 : vector<32x128xf32>
    %24 = arith.addf %14, %23 : vector<32x128xf32>
    %25 = vector.extract_strided_slice %9 {offsets = [1, 0], sizes = [1, 128], strides = [1, 1]} : vector<8x128xf32> to vector<1x128xf32>
    %26 = vector.broadcast %19 : vector<32x1xf32> to vector<32x128xf32>
    %27 = vector.broadcast %25 : vector<1x128xf32> to vector<32x128xf32>
    %28 = arith.mulf %26, %27 : vector<32x128xf32>
    %29 = arith.addf %18, %28 : vector<32x128xf32>
    %30 = vector.extract_strided_slice %7 {offsets = [0, 2], sizes = [32, 1], strides = [1, 1]} : vector<32x8xf32> to vector<32x1xf32>
    %31 = vector.extract_strided_slice %8 {offsets = [2, 0], sizes = [1, 128], strides = [1, 1]} : vector<8x128xf32> to vector<1x128xf32>
    %32 = vector.broadcast %30 : vector<32x1xf32> to vector<32x128xf32>
    %33 = vector.broadcast %31 : vector<1x128xf32> to vector<32x128xf32>
    %34 = arith.mulf %32, %33 : vector<32x128xf32>
    %35 = arith.addf %24, %34 : vector<32x128xf32>
    %36 = vector.extract_strided_slice %9 {offsets = [2, 0], sizes = [1, 128], strides = [1, 1]} : vector<8x128xf32> to vector<1x128xf32>
    %37 = vector.broadcast %30 : vector<32x1xf32> to vector<32x128xf32>
    %38 = vector.broadcast %36 : vector<1x128xf32> to vector<32x128xf32>
    %39 = arith.mulf %37, %38 : vector<32x128xf32>
    %40 = arith.addf %29, %39 : vector<32x128xf32>
    %41 = vector.extract_strided_slice %7 {offsets = [0, 3], sizes = [32, 1], strides = [1, 1]} : vector<32x8xf32> to vector<32x1xf32>
    %42 = vector.extract_strided_slice %8 {offsets = [3, 0], sizes = [1, 128], strides = [1, 1]} : vector<8x128xf32> to vector<1x128xf32>
    %43 = vector.broadcast %41 : vector<32x1xf32> to vector<32x128xf32>
    %44 = vector.broadcast %42 : vector<1x128xf32> to vector<32x128xf32>
    %45 = arith.mulf %43, %44 : vector<32x128xf32>
    %46 = arith.addf %35, %45 : vector<32x128xf32>
    %47 = vector.extract_strided_slice %9 {offsets = [3, 0], sizes = [1, 128], strides = [1, 1]} : vector<8x128xf32> to vector<1x128xf32>
    %48 = vector.broadcast %41 : vector<32x1xf32> to vector<32x128xf32>
    %49 = vector.broadcast %47 : vector<1x128xf32> to vector<32x128xf32>
    %50 = arith.mulf %48, %49 : vector<32x128xf32>
    %51 = arith.addf %40, %50 : vector<32x128xf32>
    %52 = vector.extract_strided_slice %7 {offsets = [0, 4], sizes = [32, 1], strides = [1, 1]} : vector<32x8xf32> to vector<32x1xf32>
    %53 = vector.extract_strided_slice %8 {offsets = [4, 0], sizes = [1, 128], strides = [1, 1]} : vector<8x128xf32> to vector<1x128xf32>
    %54 = vector.broadcast %52 : vector<32x1xf32> to vector<32x128xf32>
    %55 = vector.broadcast %53 : vector<1x128xf32> to vector<32x128xf32>
    %56 = arith.mulf %54, %55 : vector<32x128xf32>
    %57 = arith.addf %46, %56 : vector<32x128xf32>
    %58 = vector.extract_strided_slice %9 {offsets = [4, 0], sizes = [1, 128], strides = [1, 1]} : vector<8x128xf32> to vector<1x128xf32>
    %59 = vector.broadcast %52 : vector<32x1xf32> to vector<32x128xf32>
    %60 = vector.broadcast %58 : vector<1x128xf32> to vector<32x128xf32>
    %61 = arith.mulf %59, %60 : vector<32x128xf32>
    %62 = arith.addf %51, %61 : vector<32x128xf32>
    %63 = vector.extract_strided_slice %7 {offsets = [0, 5], sizes = [32, 1], strides = [1, 1]} : vector<32x8xf32> to vector<32x1xf32>
    %64 = vector.extract_strided_slice %8 {offsets = [5, 0], sizes = [1, 128], strides = [1, 1]} : vector<8x128xf32> to vector<1x128xf32>
    %65 = vector.broadcast %63 : vector<32x1xf32> to vector<32x128xf32>
    %66 = vector.broadcast %64 : vector<1x128xf32> to vector<32x128xf32>
    %67 = arith.mulf %65, %66 : vector<32x128xf32>
    %68 = arith.addf %57, %67 : vector<32x128xf32>
    %69 = vector.extract_strided_slice %9 {offsets = [5, 0], sizes = [1, 128], strides = [1, 1]} : vector<8x128xf32> to vector<1x128xf32>
    %70 = vector.broadcast %63 : vector<32x1xf32> to vector<32x128xf32>
    %71 = vector.broadcast %69 : vector<1x128xf32> to vector<32x128xf32>
    %72 = arith.mulf %70, %71 : vector<32x128xf32>
    %73 = arith.addf %62, %72 : vector<32x128xf32>
    %74 = vector.extract_strided_slice %7 {offsets = [0, 6], sizes = [32, 1], strides = [1, 1]} : vector<32x8xf32> to vector<32x1xf32>
    %75 = vector.extract_strided_slice %8 {offsets = [6, 0], sizes = [1, 128], strides = [1, 1]} : vector<8x128xf32> to vector<1x128xf32>
    %76 = vector.broadcast %74 : vector<32x1xf32> to vector<32x128xf32>
    %77 = vector.broadcast %75 : vector<1x128xf32> to vector<32x128xf32>
    %78 = arith.mulf %76, %77 : vector<32x128xf32>
    %79 = arith.addf %68, %78 : vector<32x128xf32>
    %80 = vector.extract_strided_slice %9 {offsets = [6, 0], sizes = [1, 128], strides = [1, 1]} : vector<8x128xf32> to vector<1x128xf32>
    %81 = vector.broadcast %74 : vector<32x1xf32> to vector<32x128xf32>
    %82 = vector.broadcast %80 : vector<1x128xf32> to vector<32x128xf32>
    %83 = arith.mulf %81, %82 : vector<32x128xf32>
    %84 = arith.addf %73, %83 : vector<32x128xf32>
    %85 = vector.extract_strided_slice %7 {offsets = [0, 7], sizes = [32, 1], strides = [1, 1]} : vector<32x8xf32> to vector<32x1xf32>
    %86 = vector.extract_strided_slice %8 {offsets = [7, 0], sizes = [1, 128], strides = [1, 1]} : vector<8x128xf32> to vector<1x128xf32>
    %87 = vector.broadcast %85 : vector<32x1xf32> to vector<32x128xf32>
    %88 = vector.broadcast %86 : vector<1x128xf32> to vector<32x128xf32>
    %89 = arith.mulf %87, %88 : vector<32x128xf32>
    %90 = arith.addf %79, %89 : vector<32x128xf32>
    %91 = vector.extract_strided_slice %9 {offsets = [7, 0], sizes = [1, 128], strides = [1, 1]} : vector<8x128xf32> to vector<1x128xf32>
    %92 = vector.broadcast %85 : vector<32x1xf32> to vector<32x128xf32>
    %93 = vector.broadcast %91 : vector<1x128xf32> to vector<32x128xf32>
    %94 = arith.mulf %92, %93 : vector<32x128xf32>
    %95 = arith.addf %84, %94 : vector<32x128xf32>
    %c0_8 = arith.constant 0 : index
    %c0_9 = arith.constant 0 : index
    %96 = vector.load %arg5[%c0_8, %c0_9] : memref<32x128xf32, #tpu.memory_space<vmem>>, vector<32x128xf32>
    tpu.vector_store %arg5[%c0_8, %c0_9], %90 {strides = array<i32>} : memref<32x128xf32, #tpu.memory_space<vmem>>, vector<32x128xf32>,
    %c0_10 = arith.constant 0 : index
    %c0_11 = arith.constant 0 : index
    %97 = vector.load %arg6[%c0_10, %c0_11] : memref<32x128xf32, #tpu.memory_space<vmem>>, vector<32x128xf32>
    tpu.vector_store %arg6[%c0_10, %c0_11], %95 {strides = array<i32>} : memref<32x128xf32, #tpu.memory_space<vmem>>, vector<32x128xf32>,
    return
  }
  func.func @transform_0(%arg0: i32) -> (i32, i32) {
    %c0_i32 = arith.constant 0 : i32
    %c0_i32_0 = arith.constant 0 : i32
    return %arg0, %c0_i32 : i32, i32
  }
  func.func @transform_1(%arg0: i32) -> (i32, i32) {
    %c0_i32 = arith.constant 0 : i32
    %c0_i32_0 = arith.constant 0 : i32
    %c0_i32_1 = arith.constant 0 : i32
    return %c0_i32, %c0_i32_0 : i32, i32
  }
  func.func @transform_2(%arg0: i32) -> (i32, i32) {
    %c0_i32 = arith.constant 0 : i32
    %c0_i32_0 = arith.constant 0 : i32
    %c0_i32_1 = arith.constant 0 : i32
    return %c0_i32, %c0_i32_0 : i32, i32
  }
  func.func @transform_3(%arg0: i32) -> (i32, i32) {
    %c0_i32 = arith.constant 0 : i32
    %c0_i32_0 = arith.constant 0 : i32
    %c0_i32_1 = arith.constant 0 : i32
    return %c0_i32, %c0_i32_0 : i32, i32
  }
  func.func @transform_4(%arg0: i32) -> (i32, i32) {
    %c0_i32 = arith.constant 0 : i32
    %c0_i32_0 = arith.constant 0 : i32
    return %arg0, %c0_i32 : i32, i32
  }
  func.func @transform_5(%arg0: i32) -> (i32, i32) {
    %c0_i32 = arith.constant 0 : i32
    %c0_i32_0 = arith.constant 0 : i32
    return %arg0, %c0_i32 : i32, i32
  }
}

</mosaic_0001>

<llo_original>
// kernel: tpu_custom_call.1
$region0: #{tpu_custom_call.1}
  #allocation0 [shape = 'u32[]', space=smem, size = 0x4, offset = 0x4, fixed_abs, tag = 'smem constant byte address 0x4 - core index']
  #allocation1 [shape = 'u32[72,128]{1,0:T(1,128)}', space=vmem, size = 0x9000, scoped, tag = 'internal scratch']
  %s0 = inlined_call_operand.hbm [shape: f32[32,32], index: 0, kind: input, shape index: {}]
  %s1 = inlined_call_operand.hbm [shape: f32[8,32], index: 1, kind: input, shape index: {}]
  %s2 = inlined_call_operand.hbm [shape: f32[8,128], index: 2, kind: input, shape index: {}]
  %s3 = inlined_call_operand.hbm [shape: f32[8,128], index: 3, kind: input, shape index: {}]
  %s4 = inlined_call_operand.hbm [shape: f32[32,128], index: 4, kind: output, shape index: {0}]
  %s5 = inlined_call_operand.hbm [shape: f32[32,128], index: 5, kind: output, shape index: {1}]
  %6 = xla_tuple %s4, %s5
  %s7 = sld [smem:[#allocation0]]
  $region50: #{tpu_custom_call.1} parent=0
    _
  %s9 = ssub.s32 1, %s7
  %s10 = scalar_select 0, %s9, %s7
  $region1: #{tpu_custom_call.1} parent=0
    #allocation2 [shape = 'u8[16384]{0}', space=vmem, size = 0x4000, scoped, tag = 'input window, operand 0, single buffered']
    #allocation3 [shape = 's32[1]{0}', space=sflag, size = 0x4, scoped, tag = 'scoped memory for tpu_custom_call.1']
    #allocation4 [shape = 's32[1]{0}', space=sflag, size = 0x4, scoped, tag = 'scoped memory for tpu_custom_call.1']
    #allocation5 [shape = 'u8[4096]{0}', space=vmem, size = 0x1000, scoped, tag = 'input window, operand 1, single buffered']
    #allocation6 [shape = 's32[1]{0}', space=sflag, size = 0x4, scoped, tag = 'scoped memory for tpu_custom_call.1']
    #allocation7 [shape = 'u8[4096]{0}', space=vmem, size = 0x1000, scoped, tag = 'input window, operand 2, single buffered']
    #allocation8 [shape = 'u8[4096]{0}', space=vmem, size = 0x1000, scoped, tag = 'input window, operand 3, single buffered']
    #allocation9 [shape = 's32[1]{0}', space=sflag, size = 0x4, scoped, tag = 'scoped memory for tpu_custom_call.1']
    #allocation10 [shape = 'u8[16384]{0}', space=vmem, size = 0x4000, scoped, tag = 'output window, operand 0, single buffered']
    #allocation11 [shape = 'u8[16384]{0}', space=vmem, size = 0x4000, scoped, tag = 'output window, operand 1, single buffered']
    #allocation12 [shape = 's32[1]{0}', space=sflag, size = 0x4, scoped, tag = 'scoped memory for tpu_custom_call.1']
    %11 = vsyncpa [#allocation3], 0
    %12 = vsyncpa [#allocation6], 0
    %13 = vsyncpa [#allocation9], 0
    %14 = vsyncpa [#allocation4], 0
    %15 = vsyncpa [#allocation12], 0
    // Predicated region
    $region2: #{tpu_custom_call.1} parent=1 // pred_check
      _
    $region3: #{tpu_custom_call.1} parent=1 // pred_check_branch
      %17 = sbr.rel (0) target = $region5
    $region4: #{tpu_custom_call.1} parent=1 // pred_region
      %19 = vsyncadd [#allocation3], 0
      %s20 = sshll.u32 %s0, 4
      %s21 = int_to_ptr.hbm [resolvable:$true] %s20
      %s22 = sshll.u32 [#allocation2], 4
      %s23 = int_to_ptr.vmem [resolvable:$true] %s22
      %28 = dma.hbm_to_vmem [thread:$0]  %s21, 512, %s23, [#allocation3], 128, 128, 8
    $region5: #{tpu_custom_call.1} parent=1 // pred_fallthru
      _
    // Predicated region
    $region6: #{tpu_custom_call.1} parent=1 // pred_check
      _
    $region7: #{tpu_custom_call.1} parent=1 // pred_check_branch
      %30 = sbr.rel (0) target = $region9
    $region8: #{tpu_custom_call.1} parent=1 // pred_region
      %32 = vsyncadd [#allocation6], 0
      %s34 = sshll.u32 %s1, 4
      %s35 = int_to_ptr.hbm [resolvable:$true] %s34
      %s36 = sshll.u32 [#allocation5], 4
      %s37 = int_to_ptr.vmem [resolvable:$true] %s36
      %39 = dma.hbm_to_vmem [thread:$0]  %s35, 128, %s37, [#allocation6]
    $region9: #{tpu_custom_call.1} parent=1 // pred_fallthru
      _
    // Predicated region
    $region10: #{tpu_custom_call.1} parent=1 // pred_check
      _
    $region11: #{tpu_custom_call.1} parent=1 // pred_check_branch
      %41 = sbr.rel (0) target = $region13
    $region12: #{tpu_custom_call.1} parent=1 // pred_region
      %43 = vsyncadd [#allocation6], 0
      %s45 = sshll.u32 %s2, 4
      %s46 = int_to_ptr.hbm [resolvable:$true] %s45
      %s47 = sshll.u32 [#allocation7], 4
      %s48 = int_to_ptr.vmem [resolvable:$true] %s47
      %50 = dma.hbm_to_vmem [thread:$0]  %s46, 128, %s48, [#allocation6]
    $region13: #{tpu_custom_call.1} parent=1 // pred_fallthru
      _
    // Predicated region
    $region14: #{tpu_custom_call.1} parent=1 // pred_check
      _
    $region15: #{tpu_custom_call.1} parent=1 // pred_check_branch
      %52 = sbr.rel (0) target = $region17
    $region16: #{tpu_custom_call.1} parent=1 // pred_region
      %54 = vsyncadd [#allocation9], 0
      %s56 = sshll.u32 %s3, 4
      %s57 = int_to_ptr.hbm [resolvable:$true] %s56
      %s58 = sshll.u32 [#allocation8], 4
      %s59 = int_to_ptr.vmem [resolvable:$true] %s58
      %61 = dma.hbm_to_vmem [thread:$0]  %s57, 128, %s59, [#allocation9]
    $region17: #{tpu_custom_call.1} parent=1 // pred_fallthru
      _
    // Predicated region
    $region18: #{tpu_custom_call.1} parent=1 // pred_check
      _
    $region19: #{tpu_custom_call.1} parent=1 // pred_check_branch
      %63 = sbr.rel (0) target = $region21
    $region20: #{tpu_custom_call.1} parent=1 // pred_region
      %65 = dma.done [#allocation3], 512
    $region21: #{tpu_custom_call.1} parent=1 // pred_fallthru
      _
    // Predicated region
    $region22: #{tpu_custom_call.1} parent=1 // pred_check
      _
    $region23: #{tpu_custom_call.1} parent=1 // pred_check_branch
      %67 = sbr.rel (0) target = $region25
    $region24: #{tpu_custom_call.1} parent=1 // pred_region
      %69 = dma.done [#allocation6], 128
    $region25: #{tpu_custom_call.1} parent=1 // pred_fallthru
      _
    // Predicated region
    $region26: #{tpu_custom_call.1} parent=1 // pred_check
      _
    $region27: #{tpu_custom_call.1} parent=1 // pred_check_branch
      %71 = sbr.rel (0) target = $region29
    $region28: #{tpu_custom_call.1} parent=1 // pred_region
      %73 = dma.done [#allocation6], 128
    $region29: #{tpu_custom_call.1} parent=1 // pred_fallthru
      _
    // Predicated region
    $region30: #{tpu_custom_call.1} parent=1 // pred_check
      _
    $region31: #{tpu_custom_call.1} parent=1 // pred_check_branch
      %75 = sbr.rel (0) target = $region33
    $region32: #{tpu_custom_call.1} parent=1 // pred_region
      %77 = dma.done [#allocation9], 128
    $region33: #{tpu_custom_call.1} parent=1 // pred_fallthru
      _
    %v78 = vld [vmem:[#allocation2] sm:$0xff]
    %v79 = vld [vmem:[#allocation2 + $0x8] sm:$0xff]
    %v80 = vld [vmem:[#allocation2 + $0x10] sm:$0xff]
    %v81 = vld [vmem:[#allocation2 + $0x18] sm:$0xff]
    %v82 = vld [vmem:[#allocation5] sm:$0xff]
    %vm83 = vcmask 261120
    %v85 = vsel %vm83, %v78, 0
    %v88 = vsel %vm83, %v79, 0
    %v91 = vsel %vm83, %v80, 0
    %v94 = vsel %vm83, %v81, 0
    %v97 = vsel %vm83, %v82, 0
    %99 = vmatpush.xpose.msra.mxu0 0.0
    %100 = vmatpush.xpose.msra.mxu0 0.0
    %101 = vmatpush.xpose.msra.mxu0 0.0
    %102 = vmatpush.xpose.msra.mxu0 0.0
    %103 = vmatpush.xpose.msra.mxu0 0.0
    %104 = vmatpush.xpose.msra.mxu0 0.0
    %105 = vmatpush.xpose.msra.mxu0 0.0
    %106 = vmatpush.xpose.msra.mxu0 0.0
    %107 = vmatpush.xpose.msra.mxu0 0.0
    %108 = vmatpush.xpose.msra.mxu0 0.0
    %109 = vmatpush.xpose.msra.mxu0 0.0
    %110 = vmatpush.xpose.msra.mxu0 0.0
    %111 = vmatpush.xpose.msra.mxu0 0.0
    %112 = vmatpush.xpose.msra.mxu0 0.0
    %113 = vmatpush.xpose.msra.mxu0 0.0
    %114 = vmatpush.xpose.msra.mxu0 %v97
    %115 = vmatmul.f32.gmra.mxu0 %v85
    %v116 = vpop.f32.mrf.mxu0
    %v117 = vadd.f32 0.0, %v116
    %118 = vmatmul.f32.gmra.mxu0 %v88
    %v119 = vpop.f32.mrf.mxu0
    %v120 = vadd.f32 0.0, %v119
    %121 = vmatmul.f32.gmra.mxu0 %v91
    %v122 = vpop.f32.mrf.mxu0
    %v123 = vadd.f32 0.0, %v122
    %124 = vmatmul.f32.gmra.mxu0 %v94
    %v125 = vpop.f32.mrf.mxu0
    %v126 = vadd.f32 0.0, %v125
    %127 = vdwg.mxu0
    %v128 = vxor.u32 %v117, 2147483648
    %v129 = vxor.u32 %v120, 2147483648
    %v130 = vxor.u32 %v123, 2147483648
    %v131 = vxor.u32 %v126, 2147483648
    %v132 = vmul.f32 %v128, 1.442695
    %v133 = vpow.pop %v132
    %v134 = vmul.f32 %v129, 1.442695
    %v135 = vpow.pop %v134
    %v136 = vmul.f32 %v130, 1.442695
    %v137 = vpow.pop %v136
    %v138 = vmul.f32 %v131, 1.442695
    %v139 = vpow.pop %v138
    %v140 = vadd.f32 %v133, 1.0
    %v141 = vadd.f32 %v135, 1.0
    %v142 = vadd.f32 %v137, 1.0
    %v143 = vadd.f32 %v139, 1.0
    %v144 = vrcp.pop %v140
    %v145 = vmul.f32 %v140, %v144
    %v146 = vsub.f32 1.0, %v145
    %v147 = vmul.f32 %v144, %v146
    %v148 = vadd.f32 %v144, %v147
    %vm149 = vweird.f32 %v140
    %vm150 = vweird.f32 %v144
    %vm151 = vmor %vm149, %vm150
    %v152 = vsel %vm151, %v144, %v148
    %v153 = vand.u32 2147483647, %v140
    %vm154 = vcmp.eq.f32.partialorder %v153, 8.507059e+37
    %v155 = vand.u32 %v140, 2147483648
    %v156 = vor.u32 1.1754944e-38, %v155
    %v157 = vsel %vm154, %v156, %v152
    %v158 = vmul.f32 1.0, %v157
    %v159 = vrcp.pop %v141
    %v160 = vmul.f32 %v141, %v159
    %v161 = vsub.f32 1.0, %v160
    %v162 = vmul.f32 %v159, %v161
    %v163 = vadd.f32 %v159, %v162
    %vm164 = vweird.f32 %v141
    %vm165 = vweird.f32 %v159
    %vm166 = vmor %vm164, %vm165
    %v167 = vsel %vm166, %v159, %v163
    %v168 = vand.u32 2147483647, %v141
    %vm169 = vcmp.eq.f32.partialorder %v168, 8.507059e+37
    %v170 = vand.u32 %v141, 2147483648
    %v171 = vor.u32 1.1754944e-38, %v170
    %v172 = vsel %vm169, %v171, %v167
    %v173 = vmul.f32 1.0, %v172
    %v174 = vrcp.pop %v142
    %v175 = vmul.f32 %v142, %v174
    %v176 = vsub.f32 1.0, %v175
    %v177 = vmul.f32 %v174, %v176
    %v178 = vadd.f32 %v174, %v177
    %vm179 = vweird.f32 %v142
    %vm180 = vweird.f32 %v174
    %vm181 = vmor %vm179, %vm180
    %v182 = vsel %vm181, %v174, %v178
    %v183 = vand.u32 2147483647, %v142
    %vm184 = vcmp.eq.f32.partialorder %v183, 8.507059e+37
    %v185 = vand.u32 %v142, 2147483648
    %v186 = vor.u32 1.1754944e-38, %v185
    %v187 = vsel %vm184, %v186, %v182
    %v188 = vmul.f32 1.0, %v187
    %v189 = vrcp.pop %v143
    %v190 = vmul.f32 %v143, %v189
    %v191 = vsub.f32 1.0, %v190
    %v192 = vmul.f32 %v189, %v191
    %v193 = vadd.f32 %v189, %v192
    %vm194 = vweird.f32 %v143
    %vm195 = vweird.f32 %v189
    %vm196 = vmor %vm194, %vm195
    %v197 = vsel %vm196, %v189, %v193
    %v198 = vand.u32 2147483647, %v143
    %vm199 = vcmp.eq.f32.partialorder %v198, 8.507059e+37
    %v200 = vand.u32 %v143, 2147483648
    %v201 = vor.u32 1.1754944e-38, %v200
    %v202 = vsel %vm199, %v201, %v197
    %v203 = vmul.f32 1.0, %v202
    %v204 = vld [vmem:[#allocation7] sm:$0xff]
    %v205 = vld [vmem:[#allocation8] sm:$0xff]
    %207 = vset.pattern.permute.xlu0 0
    %208 = vperm.xlu0 %207, %v158
    %v209 = vpop.permute.xlu0 %208
    %212 = vset.pattern.permute.xlu0 0
    %213 = vperm.xlu0 %212, %v173
    %v214 = vpop.permute.xlu0 %213
    %217 = vset.pattern.permute.xlu0 0
    %218 = vperm.xlu0 %217, %v188
    %v219 = vpop.permute.xlu0 %218
    %222 = vset.pattern.permute.xlu0 0
    %223 = vperm.xlu0 %222, %v203
    %v224 = vpop.permute.xlu0 %223
    %v226 = vperm.slane %v204, 0
    %v227 = vmul.f32 %v209, %v226
    %v228 = vmul.f32 %v214, %v226
    %v229 = vmul.f32 %v219, %v226
    %v230 = vmul.f32 %v224, %v226
    %v231 = vperm.slane %v205, 0
    %v232 = vmul.f32 %v209, %v231
    %v233 = vmul.f32 %v214, %v231
    %v234 = vmul.f32 %v219, %v231
    %v235 = vmul.f32 %v224, %v231
    %236 = vset.pattern.permute.xlu0 1
    %237 = vperm.xlu0 %236, %v158
    %v238 = vpop.permute.xlu0 %237
    %240 = vset.pattern.permute.xlu0 1
    %241 = vperm.xlu0 %240, %v173
    %v242 = vpop.permute.xlu0 %241
    %244 = vset.pattern.permute.xlu0 1
    %245 = vperm.xlu0 %244, %v188
    %v246 = vpop.permute.xlu0 %245
    %248 = vset.pattern.permute.xlu0 1
    %249 = vperm.xlu0 %248, %v203
    %v250 = vpop.permute.xlu0 %249
    %v252 = vperm.slane %v204, 1
    %v253 = vmul.f32 %v238, %v252
    %v254 = vmul.f32 %v242, %v252
    %v255 = vmul.f32 %v246, %v252
    %v256 = vmul.f32 %v250, %v252
    %v257 = vadd.f32 %v227, %v253
    %v258 = vadd.f32 %v228, %v254
    %v259 = vadd.f32 %v229, %v255
    %v260 = vadd.f32 %v230, %v256
    %v261 = vperm.slane %v205, 1
    %v262 = vmul.f32 %v238, %v261
    %v263 = vmul.f32 %v242, %v261
    %v264 = vmul.f32 %v246, %v261
    %v265 = vmul.f32 %v250, %v261
    %v266 = vadd.f32 %v232, %v262
    %v267 = vadd.f32 %v233, %v263
    %v268 = vadd.f32 %v234, %v264
    %v269 = vadd.f32 %v235, %v265
    %270 = vset.pattern.permute.xlu0 2
    %271 = vperm.xlu0 %270, %v158
    %v272 = vpop.permute.xlu0 %271
    %274 = vset.pattern.permute.xlu0 2
    %275 = vperm.xlu0 %274, %v173
    %v276 = vpop.permute.xlu0 %275
    %278 = vset.pattern.permute.xlu0 2
    %279 = vperm.xlu0 %278, %v188
    %v280 = vpop.permute.xlu0 %279
    %282 = vset.pattern.permute.xlu0 2
    %283 = vperm.xlu0 %282, %v203
    %v284 = vpop.permute.xlu0 %283
    %v286 = vperm.slane %v204, 2
    %v287 = vmul.f32 %v272, %v286
    %v288 = vmul.f32 %v276, %v286
    %v289 = vmul.f32 %v280, %v286
    %v290 = vmul.f32 %v284, %v286
    %v291 = vadd.f32 %v257, %v287
    %v292 = vadd.f32 %v258, %v288
    %v293 = vadd.f32 %v259, %v289
    %v294 = vadd.f32 %v260, %v290
    %v295 = vperm.slane %v205, 2
    %v296 = vmul.f32 %v272, %v295
    %v297 = vmul.f32 %v276, %v295
    %v298 = vmul.f32 %v280, %v295
    %v299 = vmul.f32 %v284, %v295
    %v300 = vadd.f32 %v266, %v296
    %v301 = vadd.f32 %v267, %v297
    %v302 = vadd.f32 %v268, %v298
    %v303 = vadd.f32 %v269, %v299
    %304 = vset.pattern.permute.xlu0 3
    %305 = vperm.xlu0 %304, %v158
    %v306 = vpop.permute.xlu0 %305
    %308 = vset.pattern.permute.xlu0 3
    %309 = vperm.xlu0 %308, %v173
    %v310 = vpop.permute.xlu0 %309
    %312 = vset.pattern.permute.xlu0 3
    %313 = vperm.xlu0 %312, %v188
    %v314 = vpop.permute.xlu0 %313
    %316 = vset.pattern.permute.xlu0 3
    %317 = vperm.xlu0 %316, %v203
    %v318 = vpop.permute.xlu0 %317
    %v320 = vperm.slane %v204, 3
    %v321 = vmul.f32 %v306, %v320
    %v322 = vmul.f32 %v310, %v320
    %v323 = vmul.f32 %v314, %v320
    %v324 = vmul.f32 %v318, %v320
    %v325 = vadd.f32 %v291, %v321
    %v326 = vadd.f32 %v292, %v322
    %v327 = vadd.f32 %v293, %v323
    %v328 = vadd.f32 %v294, %v324
    %v329 = vperm.slane %v205, 3
    %v330 = vmul.f32 %v306, %v329
    %v331 = vmul.f32 %v310, %v329
    %v332 = vmul.f32 %v314, %v329
    %v333 = vmul.f32 %v318, %v329
    %v334 = vadd.f32 %v300, %v330
    %v335 = vadd.f32 %v301, %v331
    %v336 = vadd.f32 %v302, %v332
    %v337 = vadd.f32 %v303, %v333
    %338 = vset.pattern.permute.xlu0 4
    %339 = vperm.xlu0 %338, %v158
    %v340 = vpop.permute.xlu0 %339
    %342 = vset.pattern.permute.xlu0 4
    %343 = vperm.xlu0 %342, %v173
    %v344 = vpop.permute.xlu0 %343
    %346 = vset.pattern.permute.xlu0 4
    %347 = vperm.xlu0 %346, %v188
    %v348 = vpop.permute.xlu0 %347
    %350 = vset.pattern.permute.xlu0 4
    %351 = vperm.xlu0 %350, %v203
    %v352 = vpop.permute.xlu0 %351
    %v354 = vperm.slane %v204, 4
    %v355 = vmul.f32 %v340, %v354
    %v356 = vmul.f32 %v344, %v354
    %v357 = vmul.f32 %v348, %v354
    %v358 = vmul.f32 %v352, %v354
    %v359 = vadd.f32 %v325, %v355
    %v360 = vadd.f32 %v326, %v356
    %v361 = vadd.f32 %v327, %v357
    %v362 = vadd.f32 %v328, %v358
    %v363 = vperm.slane %v205, 4
    %v364 = vmul.f32 %v340, %v363
    %v365 = vmul.f32 %v344, %v363
    %v366 = vmul.f32 %v348, %v363
    %v367 = vmul.f32 %v352, %v363
    %v368 = vadd.f32 %v334, %v364
    %v369 = vadd.f32 %v335, %v365
    %v370 = vadd.f32 %v336, %v366
    %v371 = vadd.f32 %v337, %v367
    %372 = vset.pattern.permute.xlu0 5
    %373 = vperm.xlu0 %372, %v158
    %v374 = vpop.permute.xlu0 %373
    %376 = vset.pattern.permute.xlu0 5
    %377 = vperm.xlu0 %376, %v173
    %v378 = vpop.permute.xlu0 %377
    %380 = vset.pattern.permute.xlu0 5
    %381 = vperm.xlu0 %380, %v188
    %v382 = vpop.permute.xlu0 %381
    %384 = vset.pattern.permute.xlu0 5
    %385 = vperm.xlu0 %384, %v203
    %v386 = vpop.permute.xlu0 %385
    %v388 = vperm.slane %v204, 5
    %v389 = vmul.f32 %v374, %v388
    %v390 = vmul.f32 %v378, %v388
    %v391 = vmul.f32 %v382, %v388
    %v392 = vmul.f32 %v386, %v388
    %v393 = vadd.f32 %v359, %v389
    %v394 = vadd.f32 %v360, %v390
    %v395 = vadd.f32 %v361, %v391
    %v396 = vadd.f32 %v362, %v392
    %v397 = vperm.slane %v205, 5
    %v398 = vmul.f32 %v374, %v397
    %v399 = vmul.f32 %v378, %v397
    %v400 = vmul.f32 %v382, %v397
    %v401 = vmul.f32 %v386, %v397
    %v402 = vadd.f32 %v368, %v398
    %v403 = vadd.f32 %v369, %v399
    %v404 = vadd.f32 %v370, %v400
    %v405 = vadd.f32 %v371, %v401
    %406 = vset.pattern.permute.xlu0 6
    %407 = vperm.xlu0 %406, %v158
    %v408 = vpop.permute.xlu0 %407
    %410 = vset.pattern.permute.xlu0 6
    %411 = vperm.xlu0 %410, %v173
    %v412 = vpop.permute.xlu0 %411
    %414 = vset.pattern.permute.xlu0 6
    %415 = vperm.xlu0 %414, %v188
    %v416 = vpop.permute.xlu0 %415
    %418 = vset.pattern.permute.xlu0 6
    %419 = vperm.xlu0 %418, %v203
    %v420 = vpop.permute.xlu0 %419
    %v422 = vperm.slane %v204, 6
    %v423 = vmul.f32 %v408, %v422
    %v424 = vmul.f32 %v412, %v422
    %v425 = vmul.f32 %v416, %v422
    %v426 = vmul.f32 %v420, %v422
    %v427 = vadd.f32 %v393, %v423
    %v428 = vadd.f32 %v394, %v424
    %v429 = vadd.f32 %v395, %v425
    %v430 = vadd.f32 %v396, %v426
    %v431 = vperm.slane %v205, 6
    %v432 = vmul.f32 %v408, %v431
    %v433 = vmul.f32 %v412, %v431
    %v434 = vmul.f32 %v416, %v431
    %v435 = vmul.f32 %v420, %v431
    %v436 = vadd.f32 %v402, %v432
    %v437 = vadd.f32 %v403, %v433
    %v438 = vadd.f32 %v404, %v434
    %v439 = vadd.f32 %v405, %v435
    %440 = vset.pattern.permute.xlu0 7
    %441 = vperm.xlu0 %440, %v158
    %v442 = vpop.permute.xlu0 %441
    %444 = vset.pattern.permute.xlu0 7
    %445 = vperm.xlu0 %444, %v173
    %v446 = vpop.permute.xlu0 %445
    %448 = vset.pattern.permute.xlu0 7
    %449 = vperm.xlu0 %448, %v188
    %v450 = vpop.permute.xlu0 %449
    %452 = vset.pattern.permute.xlu0 7
    %453 = vperm.xlu0 %452, %v203
    %v454 = vpop.permute.xlu0 %453
    %v456 = vperm.slane %v204, 7
    %v457 = vmul.f32 %v442, %v456
    %v458 = vmul.f32 %v446, %v456
    %v459 = vmul.f32 %v450, %v456
    %v460 = vmul.f32 %v454, %v456
    %v461 = vadd.f32 %v427, %v457
    %v462 = vadd.f32 %v428, %v458
    %v463 = vadd.f32 %v429, %v459
    %v464 = vadd.f32 %v430, %v460
    %v465 = vperm.slane %v205, 7
    %v466 = vmul.f32 %v442, %v465
    %v467 = vmul.f32 %v446, %v465
    %v468 = vmul.f32 %v450, %v465
    %v469 = vmul.f32 %v454, %v465
    %v470 = vadd.f32 %v436, %v466
    %v471 = vadd.f32 %v437, %v467
    %v472 = vadd.f32 %v438, %v468
    %v473 = vadd.f32 %v439, %v469
    %474 = vst [vmem:[#allocation10] sm:$0xff] %v461
    %475 = vst [vmem:[#allocation10 + $0x8] sm:$0xff] %v462
    %476 = vst [vmem:[#allocation10 + $0x10] sm:$0xff] %v463
    %477 = vst [vmem:[#allocation10 + $0x18] sm:$0xff] %v464
    %478 = vst [vmem:[#allocation11] sm:$0xff] %v470
    %479 = vst [vmem:[#allocation11 + $0x8] sm:$0xff] %v471
    %480 = vst [vmem:[#allocation11 + $0x10] sm:$0xff] %v472
    %481 = vst [vmem:[#allocation11 + $0x18] sm:$0xff] %v473
    // Predicated region
    $region34: #{tpu_custom_call.1} parent=1 // pred_check
      _
    $region35: #{tpu_custom_call.1} parent=1 // pred_check_branch
      %483 = sbr.rel (0) target = $region37
    $region36: #{tpu_custom_call.1} parent=1 // pred_region
      %485 = vsyncadd [#allocation4], 0
      %s486 = sshll.u32 [#allocation10], 4
      %s487 = int_to_ptr.vmem [resolvable:$true] %s486
      %s488 = sshll.u32 %s4, 4
      %s489 = int_to_ptr.hbm [resolvable:$true] %s488
      %494 = dma.vmem_to_hbm [thread:$0]  %s487, 512, %s489, [#allocation4], 128, 128, 8
    $region37: #{tpu_custom_call.1} parent=1 // pred_fallthru
      _
    // Predicated region
    $region38: #{tpu_custom_call.1} parent=1 // pred_check
      _
    $region39: #{tpu_custom_call.1} parent=1 // pred_check_branch
      %496 = sbr.rel (0) target = $region41
    $region40: #{tpu_custom_call.1} parent=1 // pred_region
      %498 = vsyncadd [#allocation12], 0
      %s499 = sshll.u32 [#allocation11], 4
      %s500 = int_to_ptr.vmem [resolvable:$true] %s499
      %s501 = sshll.u32 %s5, 4
      %s502 = int_to_ptr.hbm [resolvable:$true] %s501
      %507 = dma.vmem_to_hbm [thread:$0]  %s500, 512, %s502, [#allocation12], 128, 128, 8
    $region41: #{tpu_custom_call.1} parent=1 // pred_fallthru
      _
    // Predicated region
    $region42: #{tpu_custom_call.1} parent=1 // pred_check
      _
    $region43: #{tpu_custom_call.1} parent=1 // pred_check_branch
      %509 = sbr.rel (0) target = $region45
    $region44: #{tpu_custom_call.1} parent=1 // pred_region
      %511 = dma.done [#allocation4], 512
    $region45: #{tpu_custom_call.1} parent=1 // pred_fallthru
      _
    // Predicated region
    $region46: #{tpu_custom_call.1} parent=1 // pred_check
      _
    $region47: #{tpu_custom_call.1} parent=1 // pred_check_branch
      %513 = sbr.rel (0) target = $region49
    $region48: #{tpu_custom_call.1} parent=1 // pred_region
      %515 = dma.done [#allocation12], 512
    $region49: #{tpu_custom_call.1} parent=1 // pred_fallthru
      _
    %516 = vsyncpa [#allocation3], 1
    %517 = vsyncpa [#allocation6], 1
    %518 = vsyncpa [#allocation9], 1
    %519 = vsyncpa [#allocation4], 1
    %520 = vsyncpa [#allocation12], 1

</llo_original>
